<compile_context>
chip_gen: v7x
topology: tpu7x:2x2x1
jax: 0.10.0
libtpu: 0.0.40
codegen_flags: <defaults>
</compile_context>

<pallas_src>
import functools

import jax
import jax.numpy as jnp
import numpy as np
from jax.experimental import pallas as pl
from jax.experimental.pallas import tpu as pltpu

LANE = 128


def _round_up(n, m):
    return ((n + m - 1) // m) * m


def _pad2(a, rows, cols):
    return jnp.pad(a, ((0, rows - a.shape[0]), (0, cols - a.shape[1])))


# ----------------------------------------------------------------------------- kernel
def vae_kernel(x_ref, eps_ref,
               w1_ref, b1_ref,
               w2_ref, b2_ref,
               w3_ref, b3_ref,
               w4_ref, b4_ref,
               recon_ref, mean_ref, logvar_ref):
    lat_p = mean_ref.shape[1]

    # ---- encoder: Linear -> ReLU -> Linear (single merged mean|logvar head) ----
    x = x_ref[...].astype(jnp.bfloat16)
    h = jnp.dot(x, w1_ref[...], preferred_element_type=jnp.float32) + b1_ref[...]
    h = jnp.maximum(h, 0.0)
    hb = h.astype(jnp.bfloat16)

    p = jnp.dot(hb, w2_ref[...], preferred_element_type=jnp.float32) + b2_ref[...]
    mean = p[:, :lat_p]          # static slice at a 128-multiple: vreg aligned, free
    logvar = p[:, lat_p:]

    # ---- reparameterize: z = mean + eps * exp(0.5 * logvar)  (f32 elementwise) ----
    std = jnp.exp(0.5 * logvar)
    z = mean + eps_ref[...] * std

    # ---- decoder: Linear -> ReLU -> Linear ----
    h2 = jnp.dot(z.astype(jnp.bfloat16), w3_ref[...],
                 preferred_element_type=jnp.float32) + b3_ref[...]
    h2 = jnp.maximum(h2, 0.0)
    recon = jnp.dot(h2.astype(jnp.bfloat16), w4_ref[...],
                    preferred_element_type=jnp.float32) + b4_ref[...]

    recon_ref[...] = recon.astype(recon_ref.dtype)
    mean_ref[...] = mean.astype(mean_ref.dtype)
    logvar_ref[...] = logvar.astype(logvar_ref.dtype)


# --------------------------------------------------------------------- VMEM heuristics
def _vmem_capacity_bytes():
    try:
        return int(pltpu.get_tpu_info().vmem_capacity_bytes)
    except Exception:
        return 64 << 20  # conservative: v7x per-TensorCore VMEM


def _vmem_plan():
    cap = _vmem_capacity_bytes()
    # Leave headroom for Mosaic internal scratch/semaphores; never request 100%.
    vmem_limit = min(cap - (8 << 20), int(cap * 0.875))   # ~56 MiB @64, ~112 MiB @128
    vmem_budget = int(vmem_limit * 0.9)
    two_cores = cap <= (80 << 20)                         # v7x: 2 TCs share the grid
    return vmem_limit, vmem_budget, two_cores


def _pick_tb(batch, in_p, hid_p, lat_p, vmem_budget_bytes, two_cores):
    """Batch tile from a VMEM budget; generation-aware."""
    two_lat = 2 * lat_p
    # Constant-index blocks are single-buffered (pl.Buffered(1)): bf16 weights + f32 biases.
    fixed = 2 * (in_p * hid_p + hid_p * two_lat + lat_p * hid_p + hid_p * in_p)
    fixed += 4 * (hid_p + two_lat + hid_p + in_p)
    # Per batch-row VMEM: double-buffered streamed f32 tiles + live intermediates.
    per_row = 2 * 4 * (in_p + lat_p)                          # x, eps input blocks
    per_row += 2 * 4 * (in_p + 2 * lat_p)                     # recon, mean, logvar blocks
    per_row += 4 * (hid_p + two_lat + lat_p + hid_p + in_p)   # h, p, z, h2, recon (f32)
    per_row += 2 * (in_p + hid_p + lat_p + hid_p)             # bf16 cast copies
    tb = (vmem_budget_bytes - fixed) // per_row
    tb = max(8, (tb // 8) * 8)
    if tb >= 512:
        tb = (tb // 256) * 256        # keep MXU M-passes full when the tile is large
    if two_cores and batch >= 16:
        # >= 2 grid steps so dimension_semantics=("parallel",) shards across both TCs.
        tb = min(tb, max(8, (batch // 2 // 8) * 8))
    tb = min(tb, _round_up(batch, 8))
    return int(tb)


# ------------------------------------------------------------------------ param prep
def prepare_params(params):
    """One-time padding / bf16 cast / head merge (hoisted out of the per-call path)."""
    w1, b1, w2, b2, w3, b3, w4, b4 = params
    input_dim, hidden_dim = w1.shape
    latent_dim = w3.shape[0]

    in_p = _round_up(input_dim, LANE)
    hid_p = _round_up(hidden_dim, LANE)
    lat_p = _round_up(latent_dim, LANE)

    # Split head (== torch.chunk dim=1), pad each half, then re-concatenate so the
    # kernel slices at a 128-multiple lane boundary.
    w2m, w2v = w2[:, :latent_dim], w2[:, latent_dim:]
    b2m, b2v = b2[:, :latent_dim], b2[:, latent_dim:]

    pw = lambda w, r, c: _pad2(w, r, c).astype(jnp.bfloat16)
    pb = lambda b, c: _pad2(b, 1, c).astype(jnp.float32)

    w1p, b1p = pw(w1, in_p, hid_p), pb(b1, hid_p)
    w2p = jnp.concatenate([pw(w2m, hid_p, lat_p), pw(w2v, hid_p, lat_p)], axis=1)
    b2p = jnp.concatenate([pb(b2m, lat_p), pb(b2v, lat_p)], axis=1)
    w3p, b3p = pw(w3, lat_p, hid_p), pb(b3, hid_p)
    w4p, b4p = pw(w4, hid_p, in_p), pb(b4, in_p)

    return (w1p, b1p, w2p, b2p, w3p, b3p, w4p, b4p)


# --------------------------------------------------------------------------- forward
def vae_forward(x, eps, padded_params, *, input_dim, latent_dim,
                tb=None, recon_dtype=jnp.float32):
    """x: [B, input_dim] f32, eps: [B, latent_dim] f32, padded_params from prepare_params."""
    w1p, b1p, w2p, b2p, w3p, b3p, w4p, b4p = padded_params
    B = x.shape[0]
    in_p, hid_p = w1p.shape
    lat_p = w3p.shape[0]

    vmem_limit, vmem_budget, two_cores = _vmem_plan()
    if tb is None:
        tb = _pick_tb(B, in_p, hid_p, lat_p, vmem_budget, two_cores)
    tb = max(8, (min(tb, _round_up(B, 8)) // 8) * 8)
    B_p = _round_up(max(B, tb), tb)

    # TODO(synk): for a production path keep x/eps/recon in the padded [*, 128k] layout
    # persistently across calls to avoid these pad/slice HBM round trips entirely.
    xp = _pad2(x.astype(jnp.float32), B_p, in_p)
    epsp = _pad2(eps.astype(jnp.float32), B_p, lat_p)   # zero eps on padded lanes -> exact

    inputs = (xp, epsp, w1p, b1p, w2p, b2p, w3p, b3p, w4p, b4p)

    flops = 2 * B_p * (in_p * hid_p + hid_p * 2 * lat_p + lat_p * hid_p + hid_p * in_p)
    in_bytes = sum(int(np.prod(a.shape)) * a.dtype.itemsize for a in inputs)
    out_bytes = (np.dtype(recon_dtype).itemsize * B_p * in_p) + 4 * B_p * 2 * lat_p
    cost = pl.CostEstimate(
        flops=int(flops),
        transcendentals=int(B_p * lat_p),
        bytes_accessed=int(in_bytes + out_bytes),
    )

    # Constant-index weight/bias blocks: same block every step -> single-buffer them.
    def const_spec(a):
        try:
            return pl.BlockSpec(a.shape, lambda i: (0, 0), pipeline_mode=pl.Buffered(1))
        except TypeError:  # older jax without pipeline_mode kwarg
            return pl.BlockSpec(a.shape, lambda i: (0, 0))

    grid_spec = pltpu.PrefetchScalarGridSpec(
        num_scalar_prefetch=0,
        grid=(B_p // tb,),
        in_specs=[
            pl.BlockSpec((tb, in_p), lambda i: (i, 0)),    # x
            pl.BlockSpec((tb, lat_p), lambda i: (i, 0)),   # eps
            const_spec(w1p), const_spec(b1p),
            const_spec(w2p), const_spec(b2p),
            const_spec(w3p), const_spec(b3p),
            const_spec(w4p), const_spec(b4p),
        ],
        out_specs=[
            pl.BlockSpec((tb, in_p), lambda i: (i, 0)),    # reconstructed
            pl.BlockSpec((tb, lat_p), lambda i: (i, 0)),   # mean
            pl.BlockSpec((tb, lat_p), lambda i: (i, 0)),   # logvar
        ],
    )

    out_shape = (
        jax.ShapeDtypeStruct((B_p, in_p), recon_dtype),
        jax.ShapeDtypeStruct((B_p, lat_p), jnp.float32),
        jax.ShapeDtypeStruct((B_p, lat_p), jnp.float32),
    )

    recon_p, mean_p, logvar_p = pl.pallas_call(
        vae_kernel,
        out_shape=out_shape,
        grid_spec=grid_spec,
        compiler_params=pltpu.CompilerParams(
            dimension_semantics=("parallel",),
            vmem_limit_bytes=int(vmem_limit),
        ),
        cost_estimate=cost,
    )(*inputs)

    # Strip batch / feature padding outside the kernel (stores inside stay lane-dense).
    return (recon_p[:B, :input_dim],
            mean_p[:B, :latent_dim],
            logvar_p[:B, :latent_dim])


# ----------------------------------------------------------------------------- helpers
def init_params(key, input_dim, hidden_dim, latent_dim):
    """Deterministic synthetic parameter init (shapes match the torch module)."""
    ks = jax.random.split(key, 8)
    scale = 0.1
    # weights stored as [in, out] (transposed vs torch's [out, in])
    w1 = scale * jax.random.normal(ks[0], (input_dim, hidden_dim), jnp.float32)
    b1 = scale * jax.random.normal(ks[1], (1, hidden_dim), jnp.float32)
    w2 = scale * jax.random.normal(ks[2], (hidden_dim, 2 * latent_dim), jnp.float32)
    b2 = scale * jax.random.normal(ks[3], (1, 2 * latent_dim), jnp.float32)
    w3 = scale * jax.random.normal(ks[4], (latent_dim, hidden_dim), jnp.float32)
    b3 = scale * jax.random.normal(ks[5], (1, hidden_dim), jnp.float32)
    w4 = scale * jax.random.normal(ks[6], (hidden_dim, input_dim), jnp.float32)
    b4 = scale * jax.random.normal(ks[7], (1, input_dim), jnp.float32)
    return (w1, b1, w2, b2, w3, b3, w4, b4)


def vae_reference(x, eps, params):
    """Pure-JAX f32 reference (same math as the torch forward)."""
    w1, b1, w2, b2, w3, b3, w4, b4 = params
    h = jnp.maximum(x @ w1 + b1, 0.0)
    p = h @ w2 + b2
    latent_dim = w3.shape[0]
    mean, logvar = p[:, :latent_dim], p[:, latent_dim:]
    z = mean + eps * jnp.exp(0.5 * logvar)
    h2 = jnp.maximum(z @ w3 + b3, 0.0)
    recon = h2 @ w4 + b4
    return recon, mean, logvar


if __name__ == "__main__":
    input_dim, hidden_dim, latent_dim = 32, 32, 16
    batch = 16

    key = jax.random.PRNGKey(0)
    k_params, k_x, k_eps = jax.random.split(key, 3)

    params = init_params(k_params, input_dim, hidden_dim, latent_dim)
    x = jax.random.normal(k_x, (batch, input_dim), jnp.float32)
    eps = jax.random.normal(k_eps, (batch, latent_dim), jnp.float32)

    # One-time weight prep (padding / bf16 / head merge), then a jitted forward.
    prep = jax.block_until_ready(prepare_params(params))
    fwd = jax.jit(functools.partial(vae_forward,
                                    input_dim=input_dim, latent_dim=latent_dim))

    recon, mean, logvar = fwd(x, eps, prep)
    jax.block_until_ready((recon, mean, logvar))

    # sanity check against the f32 pure-JAX reference (bf16 matmul inputs -> loose tol)
    r_ref, m_ref, lv_ref = vae_reference(x, eps, params)
    np.testing.assert_allclose(np.asarray(mean), np.asarray(m_ref), atol=2e-2, rtol=2e-2)
    np.testing.assert_allclose(np.asarray(logvar), np.asarray(lv_ref), atol=2e-2, rtol=2e-2)
    np.testing.assert_allclose(np.asarray(recon), np.asarray(r_ref), atol=2e-2, rtol=2e-2)

    print("KERNEL_OK")
</pallas_src>

<mosaic_0001>
module attributes {stable_mosaic.version = 11 : i64} {
  func.func @vae_kernel(%arg0: i32, %arg1: memref<8x128xf32, #tpu.memory_space<vmem>>, %arg2: memref<8x128xf32, #tpu.memory_space<vmem>>, %arg3: memref<128x128xbf16, #tpu.memory_space<vmem>>, %arg4: memref<1x128xf32, #tpu.memory_space<vmem>>, %arg5: memref<128x256xbf16, #tpu.memory_space<vmem>>, %arg6: memref<1x256xf32, #tpu.memory_space<vmem>>, %arg7: memref<128x128xbf16, #tpu.memory_space<vmem>>, %arg8: memref<1x128xf32, #tpu.memory_space<vmem>>, %arg9: memref<128x128xbf16, #tpu.memory_space<vmem>>, %arg10: memref<1x128xf32, #tpu.memory_space<vmem>>, %arg11: memref<8x128xf32, #tpu.memory_space<vmem>>, %arg12: memref<8x128xf32, #tpu.memory_space<vmem>>, %arg13: memref<8x128xf32, #tpu.memory_space<vmem>>) attributes {dimension_semantics = [#tpu.dimension_semantics<parallel>], iteration_bounds = array<i64: 2>, scalar_prefetch = 0 : i64, scratch_operands = 0 : i64, tpu.core_type = #tpu.core_type<tc>, window_params = [{transform_indices = @transform_0, window_bounds = array<i64: 8, 128>}, {transform_indices = @transform_1, window_bounds = array<i64: 8, 128>}, {pipeline_mode = #tpu.pipeline_mode<synchronous>, transform_indices = @transform_2, window_bounds = array<i64: 128, 128>}, {pipeline_mode = #tpu.pipeline_mode<synchronous>, transform_indices = @transform_3, window_bounds = array<i64: 1, 128>}, {pipeline_mode = #tpu.pipeline_mode<synchronous>, transform_indices = @transform_4, window_bounds = array<i64: 128, 256>}, {pipeline_mode = #tpu.pipeline_mode<synchronous>, transform_indices = @transform_5, window_bounds = array<i64: 1, 256>}, {pipeline_mode = #tpu.pipeline_mode<synchronous>, transform_indices = @transform_6, window_bounds = array<i64: 128, 128>}, {pipeline_mode = #tpu.pipeline_mode<synchronous>, transform_indices = @transform_7, window_bounds = array<i64: 1, 128>}, {pipeline_mode = #tpu.pipeline_mode<synchronous>, transform_indices = @transform_8, window_bounds = array<i64: 128, 128>}, {pipeline_mode = #tpu.pipeline_mode<synchronous>, transform_indices = @transform_9, window_bounds = array<i64: 1, 128>}, {transform_indices = @transform_10, window_bounds = array<i64: 8, 128>}, {transform_indices = @transform_11, window_bounds = array<i64: 8, 128>}, {transform_indices = @transform_12, window_bounds = array<i64: 8, 128>}]} {
    %c0 = arith.constant 0 : index
    %c0_0 = arith.constant 0 : index
    %0 = vector.load %arg1[%c0, %c0_0] : memref<8x128xf32, #tpu.memory_space<vmem>>, vector<8x128xf32>
    %1 = arith.truncf %0 : vector<8x128xf32> to vector<8x128xbf16>
    %c0_1 = arith.constant 0 : index
    %c0_2 = arith.constant 0 : index
    %2 = vector.load %arg3[%c0_1, %c0_2] : memref<128x128xbf16, #tpu.memory_space<vmem>>, vector<128x128xbf16>
    %cst = arith.constant dense<0.000000e+00> : vector<8x128xf32>
    %3 = tpu.matmul %1, %2, %cst {dimension_numbers = #tpu.dot_dimension_numbers<[1], [0], [0], [1], [0, 0, 1, 1], [], []>} : vector<8x128xbf16>, vector<128x128xbf16>, vector<8x128xf32> -> vector<8x128xf32>
    %c0_3 = arith.constant 0 : index
    %c0_4 = arith.constant 0 : index
    %4 = vector.load %arg4[%c0_3, %c0_4] : memref<1x128xf32, #tpu.memory_space<vmem>>, vector<1x128xf32>
    %5 = vector.broadcast %4 : vector<1x128xf32> to vector<8x128xf32>
    %6 = arith.addf %3, %5 : vector<8x128xf32>
    %cst_5 = arith.constant 0.000000e+00 : f32
    %7 = vector.broadcast %cst_5 : f32 to vector<8x128xf32>
    %8 = arith.maximumf %6, %7 : vector<8x128xf32>
    %9 = arith.truncf %8 : vector<8x128xf32> to vector<8x128xbf16>
    %c0_6 = arith.constant 0 : index
    %c0_7 = arith.constant 0 : index
    %10 = vector.load %arg5[%c0_6, %c0_7] : memref<128x256xbf16, #tpu.memory_space<vmem>>, vector<128x256xbf16>
    %cst_8 = arith.constant dense<0.000000e+00> : vector<8x256xf32>
    %11 = tpu.matmul %9, %10, %cst_8 {dimension_numbers = #tpu.dot_dimension_numbers<[1], [0], [0], [1], [0, 0, 1, 1], [], []>} : vector<8x128xbf16>, vector<128x256xbf16>, vector<8x256xf32> -> vector<8x256xf32>
    %c0_9 = arith.constant 0 : index
    %c0_10 = arith.constant 0 : index
    %12 = vector.load %arg6[%c0_9, %c0_10] : memref<1x256xf32, #tpu.memory_space<vmem>>, vector<1x256xf32>
    %13 = vector.broadcast %12 : vector<1x256xf32> to vector<8x256xf32>
    %14 = arith.addf %11, %13 : vector<8x256xf32>
    %15 = vector.extract_strided_slice %14 {offsets = [0, 0], sizes = [8, 128], strides = [1, 1]} : vector<8x256xf32> to vector<8x128xf32>
    %16 = vector.extract_strided_slice %14 {offsets = [0, 128], sizes = [8, 128], strides = [1, 1]} : vector<8x256xf32> to vector<8x128xf32>
    %cst_11 = arith.constant 5.000000e-01 : f32
    %17 = vector.broadcast %cst_11 : f32 to vector<8x128xf32>
    %18 = arith.mulf %17, %16 : vector<8x128xf32>
    %19 = math.exp %18 : vector<8x128xf32>
    %c0_12 = arith.constant 0 : index
    %c0_13 = arith.constant 0 : index
    %20 = vector.load %arg2[%c0_12, %c0_13] : memref<8x128xf32, #tpu.memory_space<vmem>>, vector<8x128xf32>
    %21 = arith.mulf %20, %19 : vector<8x128xf32>
    %22 = arith.addf %15, %21 : vector<8x128xf32>
    %23 = arith.truncf %22 : vector<8x128xf32> to vector<8x128xbf16>
    %c0_14 = arith.constant 0 : index
    %c0_15 = arith.constant 0 : index
    %24 = vector.load %arg7[%c0_14, %c0_15] : memref<128x128xbf16, #tpu.memory_space<vmem>>, vector<128x128xbf16>
    %cst_16 = arith.constant dense<0.000000e+00> : vector<8x128xf32>
    %25 = tpu.matmul %23, %24, %cst_16 {dimension_numbers = #tpu.dot_dimension_numbers<[1], [0], [0], [1], [0, 0, 1, 1], [], []>} : vector<8x128xbf16>, vector<128x128xbf16>, vector<8x128xf32> -> vector<8x128xf32>
    %c0_17 = arith.constant 0 : index
    %c0_18 = arith.constant 0 : index
    %26 = vector.load %arg8[%c0_17, %c0_18] : memref<1x128xf32, #tpu.memory_space<vmem>>, vector<1x128xf32>
    %27 = vector.broadcast %26 : vector<1x128xf32> to vector<8x128xf32>
    %28 = arith.addf %25, %27 : vector<8x128xf32>
    %cst_19 = arith.constant 0.000000e+00 : f32
    %29 = vector.broadcast %cst_19 : f32 to vector<8x128xf32>
    %30 = arith.maximumf %28, %29 : vector<8x128xf32>
    %31 = arith.truncf %30 : vector<8x128xf32> to vector<8x128xbf16>
    %c0_20 = arith.constant 0 : index
    %c0_21 = arith.constant 0 : index
    %32 = vector.load %arg9[%c0_20, %c0_21] : memref<128x128xbf16, #tpu.memory_space<vmem>>, vector<128x128xbf16>
    %cst_22 = arith.constant dense<0.000000e+00> : vector<8x128xf32>
    %33 = tpu.matmul %31, %32, %cst_22 {dimension_numbers = #tpu.dot_dimension_numbers<[1], [0], [0], [1], [0, 0, 1, 1], [], []>} : vector<8x128xbf16>, vector<128x128xbf16>, vector<8x128xf32> -> vector<8x128xf32>
    %c0_23 = arith.constant 0 : index
    %c0_24 = arith.constant 0 : index
    %34 = vector.load %arg10[%c0_23, %c0_24] : memref<1x128xf32, #tpu.memory_space<vmem>>, vector<1x128xf32>
    %35 = vector.broadcast %34 : vector<1x128xf32> to vector<8x128xf32>
    %36 = arith.addf %33, %35 : vector<8x128xf32>
    %c0_25 = arith.constant 0 : index
    %c0_26 = arith.constant 0 : index
    %37 = vector.load %arg11[%c0_25, %c0_26] : memref<8x128xf32, #tpu.memory_space<vmem>>, vector<8x128xf32>
    tpu.vector_store %arg11[%c0_25, %c0_26], %36 {strides = array<i32>} : memref<8x128xf32, #tpu.memory_space<vmem>>, vector<8x128xf32>,
    %c0_27 = arith.constant 0 : index
    %c0_28 = arith.constant 0 : index
    %38 = vector.load %arg12[%c0_27, %c0_28] : memref<8x128xf32, #tpu.memory_space<vmem>>, vector<8x128xf32>
    tpu.vector_store %arg12[%c0_27, %c0_28], %15 {strides = array<i32>} : memref<8x128xf32, #tpu.memory_space<vmem>>, vector<8x128xf32>,
    %c0_29 = arith.constant 0 : index
    %c0_30 = arith.constant 0 : index
    %39 = vector.load %arg13[%c0_29, %c0_30] : memref<8x128xf32, #tpu.memory_space<vmem>>, vector<8x128xf32>
    tpu.vector_store %arg13[%c0_29, %c0_30], %16 {strides = array<i32>} : memref<8x128xf32, #tpu.memory_space<vmem>>, vector<8x128xf32>,
    return
  }
  func.func @transform_0(%arg0: i32) -> (i32, i32) {
    %c0_i32 = arith.constant 0 : i32
    %c0_i32_0 = arith.constant 0 : i32
    return %arg0, %c0_i32 : i32, i32
  }
  func.func @transform_1(%arg0: i32) -> (i32, i32) {
    %c0_i32 = arith.constant 0 : i32
    %c0_i32_0 = arith.constant 0 : i32
    return %arg0, %c0_i32 : i32, i32
  }
  func.func @transform_2(%arg0: i32) -> (i32, i32) {
    %c0_i32 = arith.constant 0 : i32
    %c0_i32_0 = arith.constant 0 : i32
    %c0_i32_1 = arith.constant 0 : i32
    return %c0_i32, %c0_i32_0 : i32, i32
  }
  func.func @transform_3(%arg0: i32) -> (i32, i32) {
    %c0_i32 = arith.constant 0 : i32
    %c0_i32_0 = arith.constant 0 : i32
    %c0_i32_1 = arith.constant 0 : i32
    return %c0_i32, %c0_i32_0 : i32, i32
  }
  func.func @transform_4(%arg0: i32) -> (i32, i32) {
    %c0_i32 = arith.constant 0 : i32
    %c0_i32_0 = arith.constant 0 : i32
    %c0_i32_1 = arith.constant 0 : i32
    return %c0_i32, %c0_i32_0 : i32, i32
  }
  func.func @transform_5(%arg0: i32) -> (i32, i32) {
    %c0_i32 = arith.constant 0 : i32
    %c0_i32_0 = arith.constant 0 : i32
    %c0_i32_1 = arith.constant 0 : i32
    return %c0_i32, %c0_i32_0 : i32, i32
  }
  func.func @transform_6(%arg0: i32) -> (i32, i32) {
    %c0_i32 = arith.constant 0 : i32
    %c0_i32_0 = arith.constant 0 : i32
    %c0_i32_1 = arith.constant 0 : i32
    return %c0_i32, %c0_i32_0 : i32, i32
  }
  func.func @transform_7(%arg0: i32) -> (i32, i32) {
    %c0_i32 = arith.constant 0 : i32
    %c0_i32_0 = arith.constant 0 : i32
    %c0_i32_1 = arith.constant 0 : i32
    return %c0_i32, %c0_i32_0 : i32, i32
  }
  func.func @transform_8(%arg0: i32) -> (i32, i32) {
    %c0_i32 = arith.constant 0 : i32
    %c0_i32_0 = arith.constant 0 : i32
    %c0_i32_1 = arith.constant 0 : i32
    return %c0_i32, %c0_i32_0 : i32, i32
  }
  func.func @transform_9(%arg0: i32) -> (i32, i32) {
    %c0_i32 = arith.constant 0 : i32
    %c0_i32_0 = arith.constant 0 : i32
    %c0_i32_1 = arith.constant 0 : i32
    return %c0_i32, %c0_i32_0 : i32, i32
  }
  func.func @transform_10(%arg0: i32) -> (i32, i32) {
    %c0_i32 = arith.constant 0 : i32
    %c0_i32_0 = arith.constant 0 : i32
    return %arg0, %c0_i32 : i32, i32
  }
  func.func @transform_11(%arg0: i32) -> (i32, i32) {
    %c0_i32 = arith.constant 0 : i32
    %c0_i32_0 = arith.constant 0 : i32
    return %arg0, %c0_i32 : i32, i32
  }
  func.func @transform_12(%arg0: i32) -> (i32, i32) {
    %c0_i32 = arith.constant 0 : i32
    %c0_i32_0 = arith.constant 0 : i32
    return %arg0, %c0_i32 : i32, i32
  }
}

</mosaic_0001>

<llo_original>
// kernel: vae_forward.1
$region0: #{vae_forward.1}
  #allocation0 [shape = 'u32[]', space=smem, size = 0x4, offset = 0x4, fixed_abs, tag = 'smem constant byte address 0x4 - core index']
  #allocation1 [shape = 'u32[144,128]{1,0:T(1,128)}', space=vmem, size = 0x12000, scoped, tag = 'internal scratch']
  %s0 = inlined_call_operand.vmem [shape: f32[16,128], index: 0, kind: input, shape index: {}]
  %s1 = inlined_call_operand.vmem [shape: f32[16,128], index: 1, kind: input, shape index: {}]
  %s2 = inlined_call_operand.vmem [shape: bf16[128,128], index: 2, kind: input, shape index: {}]
  %s3 = inlined_call_operand.vmem [shape: f32[1,128], index: 3, kind: input, shape index: {}]
  %s4 = inlined_call_operand.hbm [shape: bf16[128,256], index: 4, kind: input, shape index: {}]
  %s5 = inlined_call_operand.vmem [shape: f32[1,256], index: 5, kind: input, shape index: {}]
  %s6 = inlined_call_operand.hbm [shape: bf16[128,128], index: 6, kind: input, shape index: {}]
  %s7 = inlined_call_operand.vmem [shape: f32[1,128], index: 7, kind: input, shape index: {}]
  %s8 = inlined_call_operand.hbm [shape: bf16[128,128], index: 8, kind: input, shape index: {}]
  %s9 = inlined_call_operand.vmem [shape: f32[1,128], index: 9, kind: input, shape index: {}]
  %s10 = inlined_call_operand.hbm [shape: f32[16,128], index: 10, kind: output, shape index: {0}]
  %s11 = inlined_call_operand.hbm [shape: f32[16,128], index: 11, kind: output, shape index: {1}]
  %s12 = inlined_call_operand.hbm [shape: f32[16,128], index: 12, kind: output, shape index: {2}]
  %13 = xla_tuple %s10, %s11, %s12
  %s14 = sld [smem:[#allocation0]]
  $region101: #{vae_forward.1} parent=0
    _
  %s16 = ssub.s32 1, %s14
  %s17 = scalar_select 0, %s16, %s14
  $region1: #{vae_forward.1} parent=0
    #allocation2 [shape = 'u8[65536]{0}', space=vmem, size = 0x10000, scoped, tag = 'input window, operand 4, single buffered']
    #allocation3 [shape = 's32[2]{0}', space=sflag, size = 0x8, scoped, tag = 'scoped memory for vae_forward.1']
    #allocation4 [shape = 's32[2]{0}', space=sflag, size = 0x8, scoped, tag = 'scoped memory for vae_forward.1']
    #allocation5 [shape = 'u8[32768]{0}', space=vmem, size = 0x8000, scoped, tag = 'input window, operand 6, single buffered']
    #allocation6 [shape = 's32[1]{0}', space=sflag, size = 0x4, scoped, tag = 'scoped memory for vae_forward.1']
    #allocation7 [shape = 'u8[32768]{0}', space=vmem, size = 0x8000, scoped, tag = 'input window, operand 8, single buffered']
    #allocation8 [shape = 'u8[8192]{0}', space=vmem, size = 0x2000, scoped, tag = 'output window, operand 0']
    #allocation9 [shape = 'u8[8192]{0}', space=vmem, size = 0x2000, scoped, tag = 'output window, operand 1']
    #allocation10 [shape = 's32[2]{0}', space=sflag, size = 0x8, scoped, tag = 'scoped memory for vae_forward.1']
    #allocation11 [shape = 'u8[8192]{0}', space=vmem, size = 0x2000, scoped, tag = 'output window, operand 2']
    %18 = vsyncpa [#allocation3], 0
    %19 = vsyncpa [#allocation6], 0
    %20 = vsyncpa [#allocation4], 0
    %s21 = scalar_lea.sflag [#allocation4], 1
    %22 = vsyncpa %s21, 0
    %23 = vsyncpa [#allocation10], 0
    %s24 = scalar_lea.sflag [#allocation10], 1
    %25 = vsyncpa %s24, 0
    loop: start=0, step=1, limit=4
    $region2: #{vae_forward.1} parent=1 // loop_pre_header
      _
    $region3: #{vae_forward.1} parent=1 // loop_header
      %s27 = sphi 0, %s31
      %p28 = scmp.ge.s32.totalorder %s27, 4
      %s37 = sphi 0, %s39
      %s40 = sphi 0, %s37
      %s41 = sphi 0, %s40
      %s57 = sphi 0, %s41
      %s63 = sphi 0, %s65
      %s66 = sphi 0, %s63
      %s67 = sphi 0, %s66
      %s83 = sphi 0, %s67
      %s87 = sphi 0, %s87
      %s89 = sphi 0, %s87
      %s90 = sphi 0, %s89
      %s104 = sphi 0, %s90
      %s108 = sphi 0, %s108
      %s110 = sphi 0, %s108
      %s111 = sphi 0, %s110
      %s125 = sphi 0, %s111
      %s129 = sphi 0, %s129
      %s131 = sphi 0, %s129
      %s132 = sphi 0, %s131
      %s146 = sphi 0, %s132
      %s150 = sphi 0, %s150
      %s152 = sphi 0, %s150
      %s153 = sphi 0, %s152
      %s167 = sphi 0, %s153
      %s171 = sphi 0, %s171
      %s173 = sphi 0, %s171
      %s174 = sphi 0, %s173
      %s188 = sphi 0, %s174
      %s192 = sphi 0, %s192
      %s194 = sphi 0, %s192
      %s195 = sphi 0, %s194
      %s209 = sphi 0, %s195
      %s213 = sphi 0, %s213
      %s215 = sphi 0, %s213
      %s216 = sphi 0, %s215
      %s230 = sphi 0, %s216
      %s234 = sphi 0, %s234
      %s236 = sphi 0, %s234
      %s237 = sphi 0, %s236
      %s251 = sphi 0, %s237
      %s257 = sphi 0, %s259
      %s260 = sphi 0, %s257
      %s261 = sphi 0, %s260
      %s277 = sphi 0, %s261
      %s283 = sphi 0, %s285
      %s286 = sphi 0, %s283
      %s287 = sphi 0, %s286
      %s303 = sphi 0, %s287
      %s309 = sphi 0, %s311
      %s312 = sphi 0, %s309
      %s313 = sphi 0, %s312
      %s329 = sphi 0, %s313
    $region4: #{vae_forward.1} parent=1 // loop_header_branch
      %30 = sbr.rel (%p28) target = $region8
    $region5: #{vae_forward.1} parent=1 // loop_body
      %s32 = ssub.s32 %s27, 1
      %s33 = ssub.s32 %s27, 2
      %s34 = sadd.s32 %s27, 1
      %s35 = ssub.s32 %s27, %s34
      %p36 = scmp.eq.s32.totalorder %s35, 0
      %s38 = sadd.s32 %s37, 1
      %s39 = scalar_select %p36, %s37, %s38
      %p42 = pneg %p36
      %p43 = scmp.eq.s32.totalorder %s27, 1
      %p44 = por %p42, %p43
      %p45 = scmp.ne.s32.totalorder %s37, %s40
      %p46 = scmp.eq.s32.totalorder %s27, 0
      %p47 = por %p45, %p46
      %p48 = scmp.ne.s32.totalorder %s37, %s40
      %p49 = scmp.eq.s32.totalorder %s32, 1
      %p50 = por %p48, %p49
      %p51 = scmp.ne.s32.totalorder %s40, %s41
      %p52 = scmp.eq.s32.totalorder %s32, 0
      %p53 = por %p51, %p52
      %p54 = scmp.ne.s32.totalorder %s40, %s41
      %p55 = scmp.eq.s32.totalorder %s33, 1
      %p56 = por %p54, %p55
      %p58 = scmp.ne.s32.totalorder %s41, %s57
      %p59 = scmp.eq.s32.totalorder %s33, 0
      %p60 = por %p58, %p59
      %s61 = ssub.s32 %s27, %s34
      %p62 = scmp.eq.s32.totalorder %s61, 0
      %s64 = sadd.s32 %s63, 1
      %s65 = scalar_select %p62, %s63, %s64
      %p68 = pneg %p62
      %p69 = scmp.eq.s32.totalorder %s27, 1
      %p70 = por %p68, %p69
      %p71 = scmp.ne.s32.totalorder %s63, %s66
      %p72 = scmp.eq.s32.totalorder %s27, 0
      %p73 = por %p71, %p72
      %p74 = scmp.ne.s32.totalorder %s63, %s66
      %p75 = scmp.eq.s32.totalorder %s32, 1
      %p76 = por %p74, %p75
      %p77 = scmp.ne.s32.totalorder %s66, %s67
      %p78 = scmp.eq.s32.totalorder %s32, 0
      %p79 = por %p77, %p78
      %p80 = scmp.ne.s32.totalorder %s66, %s67
      %p81 = scmp.eq.s32.totalorder %s33, 1
      %p82 = por %p80, %p81
      %p84 = scmp.ne.s32.totalorder %s67, %s83
      %p85 = scmp.eq.s32.totalorder %s33, 0
      %p86 = por %p84, %p85
      %s88 = sadd.s32 %s87, 1
      %p91 = scmp.eq.s32.totalorder %s27, 1
      %p92 = scmp.ne.s32.totalorder %s87, %s89
      %p93 = scmp.eq.s32.totalorder %s27, 0
      %p94 = por %p92, %p93
      %p95 = scmp.ne.s32.totalorder %s87, %s89
      %p96 = scmp.eq.s32.totalorder %s32, 1
      %p97 = por %p95, %p96
      %p98 = scmp.ne.s32.totalorder %s89, %s90
      %p99 = scmp.eq.s32.totalorder %s32, 0
      %p100 = por %p98, %p99
      %p101 = scmp.ne.s32.totalorder %s89, %s90
      %p102 = scmp.eq.s32.totalorder %s33, 1
      %p103 = por %p101, %p102
      %p105 = scmp.ne.s32.totalorder %s90, %s104
      %p106 = scmp.eq.s32.totalorder %s33, 0
      %p107 = por %p105, %p106
      %s109 = sadd.s32 %s108, 1
      %p112 = scmp.eq.s32.totalorder %s27, 1
      %p113 = scmp.ne.s32.totalorder %s108, %s110
      %p114 = scmp.eq.s32.totalorder %s27, 0
      %p115 = por %p113, %p114
      %p116 = scmp.ne.s32.totalorder %s108, %s110
      %p117 = scmp.eq.s32.totalorder %s32, 1
      %p118 = por %p116, %p117
      %p119 = scmp.ne.s32.totalorder %s110, %s111
      %p120 = scmp.eq.s32.totalorder %s32, 0
      %p121 = por %p119, %p120
      %p122 = scmp.ne.s32.totalorder %s110, %s111
      %p123 = scmp.eq.s32.totalorder %s33, 1
      %p124 = por %p122, %p123
      %p126 = scmp.ne.s32.totalorder %s111, %s125
      %p127 = scmp.eq.s32.totalorder %s33, 0
      %p128 = por %p126, %p127
      %s130 = sadd.s32 %s129, 1
      %p133 = scmp.eq.s32.totalorder %s27, 1
      %p134 = scmp.ne.s32.totalorder %s129, %s131
      %p135 = scmp.eq.s32.totalorder %s27, 0
      %p136 = por %p134, %p135
      %p137 = scmp.ne.s32.totalorder %s129, %s131
      %p138 = scmp.eq.s32.totalorder %s32, 1
      %p139 = por %p137, %p138
      %p140 = scmp.ne.s32.totalorder %s131, %s132
      %p141 = scmp.eq.s32.totalorder %s32, 0
      %p142 = por %p140, %p141
      %p143 = scmp.ne.s32.totalorder %s131, %s132
      %p144 = scmp.eq.s32.totalorder %s33, 1
      %p145 = por %p143, %p144
      %p147 = scmp.ne.s32.totalorder %s132, %s146
      %p148 = scmp.eq.s32.totalorder %s33, 0
      %p149 = por %p147, %p148
      %s151 = sadd.s32 %s150, 1
      %p154 = scmp.eq.s32.totalorder %s27, 1
      %p155 = scmp.ne.s32.totalorder %s150, %s152
      %p156 = scmp.eq.s32.totalorder %s27, 0
      %p157 = por %p155, %p156
      %p158 = scmp.ne.s32.totalorder %s150, %s152
      %p159 = scmp.eq.s32.totalorder %s32, 1
      %p160 = por %p158, %p159
      %p161 = scmp.ne.s32.totalorder %s152, %s153
      %p162 = scmp.eq.s32.totalorder %s32, 0
      %p163 = por %p161, %p162
      %p164 = scmp.ne.s32.totalorder %s152, %s153
      %p165 = scmp.eq.s32.totalorder %s33, 1
      %p166 = por %p164, %p165
      %p168 = scmp.ne.s32.totalorder %s153, %s167
      %p169 = scmp.eq.s32.totalorder %s33, 0
      %p170 = por %p168, %p169
      %s172 = sadd.s32 %s171, 1
      %p175 = scmp.eq.s32.totalorder %s27, 1
      %p176 = scmp.ne.s32.totalorder %s171, %s173
      %p177 = scmp.eq.s32.totalorder %s27, 0
      %p178 = por %p176, %p177
      %p179 = scmp.ne.s32.totalorder %s171, %s173
      %p180 = scmp.eq.s32.totalorder %s32, 1
      %p181 = por %p179, %p180
      %p182 = scmp.ne.s32.totalorder %s173, %s174
      %p183 = scmp.eq.s32.totalorder %s32, 0
      %p184 = por %p182, %p183
      %p185 = scmp.ne.s32.totalorder %s173, %s174
      %p186 = scmp.eq.s32.totalorder %s33, 1
      %p187 = por %p185, %p186
      %p189 = scmp.ne.s32.totalorder %s174, %s188
      %p190 = scmp.eq.s32.totalorder %s33, 0
      %p191 = por %p189, %p190
      %s193 = sadd.s32 %s192, 1
      %p196 = scmp.eq.s32.totalorder %s27, 1
      %p197 = scmp.ne.s32.totalorder %s192, %s194
      %p198 = scmp.eq.s32.totalorder %s27, 0
      %p199 = por %p197, %p198
      %p200 = scmp.ne.s32.totalorder %s192, %s194
      %p201 = scmp.eq.s32.totalorder %s32, 1
      %p202 = por %p200, %p201
      %p203 = scmp.ne.s32.totalorder %s194, %s195
      %p204 = scmp.eq.s32.totalorder %s32, 0
      %p205 = por %p203, %p204
      %p206 = scmp.ne.s32.totalorder %s194, %s195
      %p207 = scmp.eq.s32.totalorder %s33, 1
      %p208 = por %p206, %p207
      %p210 = scmp.ne.s32.totalorder %s195, %s209
      %p211 = scmp.eq.s32.totalorder %s33, 0
      %p212 = por %p210, %p211
      %s214 = sadd.s32 %s213, 1
      %p217 = scmp.eq.s32.totalorder %s27, 1
      %p218 = scmp.ne.s32.totalorder %s213, %s215
      %p219 = scmp.eq.s32.totalorder %s27, 0
      %p220 = por %p218, %p219
      %p221 = scmp.ne.s32.totalorder %s213, %s215
      %p222 = scmp.eq.s32.totalorder %s32, 1
      %p223 = por %p221, %p222
      %p224 = scmp.ne.s32.totalorder %s215, %s216
      %p225 = scmp.eq.s32.totalorder %s32, 0
      %p226 = por %p224, %p225
      %p227 = scmp.ne.s32.totalorder %s215, %s216
      %p228 = scmp.eq.s32.totalorder %s33, 1
      %p229 = por %p227, %p228
      %p231 = scmp.ne.s32.totalorder %s216, %s230
      %p232 = scmp.eq.s32.totalorder %s33, 0
      %p233 = por %p231, %p232
      %s235 = sadd.s32 %s234, 1
      %p238 = scmp.eq.s32.totalorder %s27, 1
      %p239 = scmp.ne.s32.totalorder %s234, %s236
      %p240 = scmp.eq.s32.totalorder %s27, 0
      %p241 = por %p239, %p240
      %p242 = scmp.ne.s32.totalorder %s234, %s236
      %p243 = scmp.eq.s32.totalorder %s32, 1
      %p244 = por %p242, %p243
      %p245 = scmp.ne.s32.totalorder %s236, %s237
      %p246 = scmp.eq.s32.totalorder %s32, 0
      %p247 = por %p245, %p246
      %p248 = scmp.ne.s32.totalorder %s236, %s237
      %p249 = scmp.eq.s32.totalorder %s33, 1
      %p250 = por %p248, %p249
      %p252 = scmp.ne.s32.totalorder %s237, %s251
      %p253 = scmp.eq.s32.totalorder %s33, 0
      %p254 = por %p252, %p253
      %s255 = ssub.s32 %s27, %s34
      %p256 = scmp.eq.s32.totalorder %s255, 0
      %s258 = sadd.s32 %s257, 1
      %s259 = scalar_select %p256, %s257, %s258
      %p262 = pneg %p256
      %p263 = scmp.eq.s32.totalorder %s27, 1
      %p264 = por %p262, %p263
      %p265 = scmp.ne.s32.totalorder %s257, %s260
      %p266 = scmp.eq.s32.totalorder %s27, 0
      %p267 = por %p265, %p266
      %p268 = scmp.ne.s32.totalorder %s257, %s260
      %p269 = scmp.eq.s32.totalorder %s32, 1
      %p270 = por %p268, %p269
      %p271 = scmp.ne.s32.totalorder %s260, %s261
      %p272 = scmp.eq.s32.totalorder %s32, 0
      %p273 = por %p271, %p272
      %p274 = scmp.ne.s32.totalorder %s260, %s261
      %p275 = scmp.eq.s32.totalorder %s33, 1
      %p276 = por %p274, %p275
      %p278 = scmp.ne.s32.totalorder %s261, %s277
      %p279 = scmp.eq.s32.totalorder %s33, 0
      %p280 = por %p278, %p279
      %s281 = ssub.s32 %s27, %s34
      %p282 = scmp.eq.s32.totalorder %s281, 0
      %s284 = sadd.s32 %s283, 1
      %s285 = scalar_select %p282, %s283, %s284
      %p288 = pneg %p282
      %p289 = scmp.eq.s32.totalorder %s27, 1
      %p290 = por %p288, %p289
      %p291 = scmp.ne.s32.totalorder %s283, %s286
      %p292 = scmp.eq.s32.totalorder %s27, 0
      %p293 = por %p291, %p292
      %p294 = scmp.ne.s32.totalorder %s283, %s286
      %p295 = scmp.eq.s32.totalorder %s32, 1
      %p296 = por %p294, %p295
      %p297 = scmp.ne.s32.totalorder %s286, %s287
      %p298 = scmp.eq.s32.totalorder %s32, 0
      %p299 = por %p297, %p298
      %p300 = scmp.ne.s32.totalorder %s286, %s287
      %p301 = scmp.eq.s32.totalorder %s33, 1
      %p302 = por %p300, %p301
      %p304 = scmp.ne.s32.totalorder %s287, %s303
      %p305 = scmp.eq.s32.totalorder %s33, 0
      %p306 = por %p304, %p305
      %s307 = ssub.s32 %s27, %s34
      %p308 = scmp.eq.s32.totalorder %s307, 0
      %s310 = sadd.s32 %s309, 1
      %s311 = scalar_select %p308, %s309, %s310
      %p314 = pneg %p308
      %p315 = scmp.eq.s32.totalorder %s27, 1
      %p316 = por %p314, %p315
      %p317 = scmp.ne.s32.totalorder %s309, %s312
      %p318 = scmp.eq.s32.totalorder %s27, 0
      %p319 = por %p317, %p318
      %p320 = scmp.ne.s32.totalorder %s309, %s312
      %p321 = scmp.eq.s32.totalorder %s32, 1
      %p322 = por %p320, %p321
      %p323 = scmp.ne.s32.totalorder %s312, %s313
      %p324 = scmp.eq.s32.totalorder %s32, 0
      %p325 = por %p323, %p324
      %p326 = scmp.ne.s32.totalorder %s312, %s313
      %p327 = scmp.eq.s32.totalorder %s33, 1
      %p328 = por %p326, %p327
      %p330 = scmp.ne.s32.totalorder %s313, %s329
      %p331 = scmp.eq.s32.totalorder %s33, 0
      %p332 = por %p330, %p331
      %p333 = scmp.le.s32.totalorder 1, %s27
      %p334 = scmp.lt.s32.totalorder %s27, 3
      %p335 = pnand %p333, %p334
      %p336 = pneg %p335
      // Predicated region
      $region9: #{vae_forward.1} parent=5 // pred_check
        _
      $region10: #{vae_forward.1} parent=5 // pred_check_branch
        %338 = sbr.rel (%p335) target = $region12
      $region11: #{vae_forward.1} parent=5 // pred_region
        %s339 = ssub.s32 %s27, 1
        // Predicated region
        $region13: #{vae_forward.1} parent=11 // pred_check
          %p340 = pneg %p100
        $region14: #{vae_forward.1} parent=11 // pred_check_branch
          %342 = sbr.rel (%p340) target = $region16
        $region15: #{vae_forward.1} parent=11 // pred_region
          _
        $region16: #{vae_forward.1} parent=11 // pred_fallthru
          _
        // Predicated region
        $region17: #{vae_forward.1} parent=11 // pred_check
          %p343 = pneg %p121
        $region18: #{vae_forward.1} parent=11 // pred_check_branch
          %345 = sbr.rel (%p343) target = $region20
        $region19: #{vae_forward.1} parent=11 // pred_region
          _
        $region20: #{vae_forward.1} parent=11 // pred_fallthru
          _
        // Predicated region
        $region21: #{vae_forward.1} parent=11 // pred_check
          %p346 = pneg %p142
        $region22: #{vae_forward.1} parent=11 // pred_check_branch
          %348 = sbr.rel (%p346) target = $region24
        $region23: #{vae_forward.1} parent=11 // pred_region
          %s350 = ssub.s32 2048, 2048
          %351 = vsyncadd [#allocation3], %s350
          %s352 = sshll.u32 [#allocation2], 4
          %s353 = int_to_ptr.vmem [resolvable:$true] %s352
          %358 = dma.hbm_to_vmem [thread:$0]  %s4, 2048, %s353, [#allocation3], 128, 128, 8
        $region24: #{vae_forward.1} parent=11 // pred_fallthru
          _
        // Predicated region
        $region25: #{vae_forward.1} parent=11 // pred_check
          %p359 = pneg %p163
        $region26: #{vae_forward.1} parent=11 // pred_check_branch
          %361 = sbr.rel (%p359) target = $region28
        $region27: #{vae_forward.1} parent=11 // pred_region
          _
        $region28: #{vae_forward.1} parent=11 // pred_fallthru
          _
        // Predicated region
        $region29: #{vae_forward.1} parent=11 // pred_check
          %p362 = pneg %p184
        $region30: #{vae_forward.1} parent=11 // pred_check_branch
          %364 = sbr.rel (%p362) target = $region32
        $region31: #{vae_forward.1} parent=11 // pred_region
          %s366 = ssub.s32 1024, 1024
          %367 = vsyncadd [#allocation6], %s366
          %s368 = sshll.u32 [#allocation5], 4
          %s369 = int_to_ptr.vmem [resolvable:$true] %s368
          %374 = dma.hbm_to_vmem [thread:$0]  %s6, 1024, %s369, [#allocation6], 64, 64, 4
        $region32: #{vae_forward.1} parent=11 // pred_fallthru
          _
        // Predicated region
        $region33: #{vae_forward.1} parent=11 // pred_check
          %p375 = pneg %p205
        $region34: #{vae_forward.1} parent=11 // pred_check_branch
          %377 = sbr.rel (%p375) target = $region36
        $region35: #{vae_forward.1} parent=11 // pred_region
          _
        $region36: #{vae_forward.1} parent=11 // pred_fallthru
          _
        // Predicated region
        $region37: #{vae_forward.1} parent=11 // pred_check
          %p378 = pneg %p226
        $region38: #{vae_forward.1} parent=11 // pred_check_branch
          %380 = sbr.rel (%p378) target = $region40
        $region39: #{vae_forward.1} parent=11 // pred_region
          %s382 = ssub.s32 1024, 1024
          %383 = vsyncadd [#allocation6], %s382
          %s384 = sshll.u32 [#allocation7], 4
          %s385 = int_to_ptr.vmem [resolvable:$true] %s384
          %390 = dma.hbm_to_vmem [thread:$0]  %s8, 1024, %s385, [#allocation6], 64, 64, 4
        $region40: #{vae_forward.1} parent=11 // pred_fallthru
          _
        // Predicated region
        $region41: #{vae_forward.1} parent=11 // pred_check
          %p391 = pneg %p247
        $region42: #{vae_forward.1} parent=11 // pred_check_branch
          %393 = sbr.rel (%p391) target = $region44
        $region43: #{vae_forward.1} parent=11 // pred_region
          _
        $region44: #{vae_forward.1} parent=11 // pred_fallthru
          _
      $region12: #{vae_forward.1} parent=5 // pred_fallthru
        _
      %p394 = scmp.lt.s32.totalorder %s27, 2
      // Predicated region
      $region45: #{vae_forward.1} parent=5 // pred_check
        %p395 = pneg %p394
      $region46: #{vae_forward.1} parent=5 // pred_check_branch
        %397 = sbr.rel (%p395) target = $region48
      $region47: #{vae_forward.1} parent=5 // pred_region
        // Predicated region
        $region49: #{vae_forward.1} parent=47 // pred_check
          %p398 = pneg %p47
        $region50: #{vae_forward.1} parent=47 // pred_check_branch
          %400 = sbr.rel (%p398) target = $region52
        $region51: #{vae_forward.1} parent=47 // pred_region
          %p401 = scmp.lt.s32.totalorder %s27, 1
          %s402 = scalar_select %p401, %s27, 1
          %s403 = smul.addr %s402, 8
          %s404 = scalar_lea.vmem %s0, %s403
        $region52: #{vae_forward.1} parent=47 // pred_fallthru
          _
        // Predicated region
        $region53: #{vae_forward.1} parent=47 // pred_check
          %p405 = pneg %p73
        $region54: #{vae_forward.1} parent=47 // pred_check_branch
          %407 = sbr.rel (%p405) target = $region56
        $region55: #{vae_forward.1} parent=47 // pred_region
          %p408 = scmp.lt.s32.totalorder %s27, 1
          %s409 = scalar_select %p408, %s27, 1
          %s410 = smul.addr %s409, 8
          %s411 = scalar_lea.vmem %s1, %s410
        $region56: #{vae_forward.1} parent=47 // pred_fallthru
          _
      $region48: #{vae_forward.1} parent=5 // pred_fallthru
        _
      %p412 = scmp.le.s32.totalorder 1, %s27
      %p413 = scmp.lt.s32.totalorder %s27, 3
      %p414 = pnand %p412, %p413
      %p415 = pneg %p414
      // Predicated region
      $region57: #{vae_forward.1} parent=5 // pred_check
        _
      $region58: #{vae_forward.1} parent=5 // pred_check_branch
        %417 = sbr.rel (%p414) target = $region60
      $region59: #{vae_forward.1} parent=5 // pred_region
        %s418 = ssub.s32 %s27, 1
        // Predicated region
        $region61: #{vae_forward.1} parent=59 // pred_check
          %p419 = pneg %p142
        $region62: #{vae_forward.1} parent=59 // pred_check_branch
          %421 = sbr.rel (%p419) target = $region64
        $region63: #{vae_forward.1} parent=59 // pred_region
          %422 = dma.done [#allocation3], 2048
        $region64: #{vae_forward.1} parent=59 // pred_fallthru
          _
        // Predicated region
        $region65: #{vae_forward.1} parent=59 // pred_check
          %p423 = pneg %p184
        $region66: #{vae_forward.1} parent=59 // pred_check_branch
          %425 = sbr.rel (%p423) target = $region68
        $region67: #{vae_forward.1} parent=59 // pred_region
          %426 = dma.done [#allocation6], 1024
        $region68: #{vae_forward.1} parent=59 // pred_fallthru
          _
        // Predicated region
        $region69: #{vae_forward.1} parent=59 // pred_check
          %p427 = pneg %p226
        $region70: #{vae_forward.1} parent=59 // pred_check_branch
          %429 = sbr.rel (%p427) target = $region72
        $region71: #{vae_forward.1} parent=59 // pred_region
          %430 = dma.done [#allocation6], 1024
        $region72: #{vae_forward.1} parent=59 // pred_fallthru
          _
        %p431 = scmp.lt.s32.totalorder %s32, 1
        %s432 = scalar_select %p431, %s32, 1
        %s433 = smul.addr %s432, 8
        %s434 = scalar_lea.vmem %s0, %s433
        %p435 = pneg %p53
        %p436 = pneg %p50
        %p437 = scmp.lt.s32.totalorder %s32, 1
        %s438 = scalar_select %p437, %s32, 1
        %s439 = smul.addr %s438, 8
        %s440 = scalar_lea.vmem %s1, %s439
        %p441 = pneg %p79
        %p442 = pneg %p76
        %p443 = pneg %p100
        %p444 = pneg %p97
        %p445 = pneg %p121
        %p446 = pneg %p118
        %p447 = pneg %p142
        %p448 = pneg %p139
        %p449 = pneg %p163
        %p450 = pneg %p160
        %p451 = pneg %p184
        %p452 = pneg %p181
        %p453 = pneg %p205
        %p454 = pneg %p202
        %p455 = pneg %p226
        %p456 = pneg %p223
        %p457 = pneg %p247
        %p458 = pneg %p244
        %p459 = pneg %p273
        %p460 = pneg %p270
        %s461 = sand.u32 %s260, 1
        %s462 = scalar_lea.sflag [#allocation4], %s461
        %s463 = sand.u32 %s260, 1
        %s464 = smul.addr %s463, 8
        %s465 = scalar_lea.vmem [#allocation8], %s464
        %p466 = pneg %p299
        %p467 = pneg %p296
        %s468 = sand.u32 %s32, 1
        %s469 = scalar_lea.sflag [#allocation10], %s468
        %s470 = sand.u32 %s286, 1
        %s471 = smul.addr %s470, 8
        %s472 = scalar_lea.vmem [#allocation9], %s471
        %p473 = pneg %p325
        %p474 = pneg %p322
        %s475 = sand.u32 %s32, 1
        %s476 = scalar_lea.sflag [#allocation10], %s475
        %s477 = sand.u32 %s312, 1
        %s478 = smul.addr %s477, 8
        %s479 = scalar_lea.vmem [#allocation11], %s478
        %p480 = scmp.lt.s32.totalorder %s32, 1
        %s481 = scalar_select %p480, %s32, 1
        %s482 = smul.addr %s481, 8
        %s483 = scalar_lea.vmem %s0, %s482
        %p484 = scmp.lt.s32.totalorder %s32, 1
        %s485 = scalar_select %p484, %s32, 1
        %s486 = smul.addr %s485, 8
        %s487 = scalar_lea.vmem %s1, %s486
        %v489 = vld [vmem:[%s483] sm:$0xff]
        %v490 = vpack.c.bf16 %v489, %v489
        %v491 = vld [vmem:[%s2] sm:$0xf]
        %v492 = vld [vmem:[%s2 + $0x4] sm:$0xf]
        %v493 = vld [vmem:[%s2 + $0x8] sm:$0xf]
        %v494 = vld [vmem:[%s2 + $0xc] sm:$0xf]
        %v495 = vld [vmem:[%s2 + $0x10] sm:$0xf]
        %v496 = vld [vmem:[%s2 + $0x14] sm:$0xf]
        %v497 = vld [vmem:[%s2 + $0x18] sm:$0xf]
        %v498 = vld [vmem:[%s2 + $0x1c] sm:$0xf]
        %v499 = vld [vmem:[%s2 + $0x20] sm:$0xf]
        %v500 = vld [vmem:[%s2 + $0x24] sm:$0xf]
        %v501 = vld [vmem:[%s2 + $0x28] sm:$0xf]
        %v502 = vld [vmem:[%s2 + $0x2c] sm:$0xf]
        %v503 = vld [vmem:[%s2 + $0x30] sm:$0xf]
        %v504 = vld [vmem:[%s2 + $0x34] sm:$0xf]
        %v505 = vld [vmem:[%s2 + $0x38] sm:$0xf]
        %v506 = vld [vmem:[%s2 + $0x3c] sm:$0xf]
        %v507 = vld [vmem:[%s3] sm:$0x1]
        %v509 = vlaneseq
        %v510 = vshrl.u32 %v509, 7
        %v511 = vsub.s32 0, %v510
        %v512 = vrot.slane %v507, %v511
        %v530 = vunpack.c.l.b16 %v491
        %v531 = vunpack.c.l.b16 %v492
        %v532 = vunpack.c.l.b16 %v493
        %v533 = vunpack.c.l.b16 %v494
        %v534 = vunpack.c.l.b16 %v495
        %v535 = vunpack.c.l.b16 %v496
        %v536 = vunpack.c.l.b16 %v497
        %v537 = vunpack.c.l.b16 %v498
        %v538 = vunpack.c.l.b16 %v499
        %v539 = vunpack.c.l.b16 %v500
        %v540 = vunpack.c.l.b16 %v501
        %v541 = vunpack.c.l.b16 %v502
        %v542 = vunpack.c.l.b16 %v503
        %v543 = vunpack.c.l.b16 %v504
        %v544 = vunpack.c.l.b16 %v505
        %v545 = vunpack.c.l.b16 %v506
        %v546 = vpack.c.b16 %v531, %v530
        %v547 = vpack.c.b16 %v533, %v532
        %v548 = vpack.c.b16 %v535, %v534
        %v549 = vpack.c.b16 %v537, %v536
        %v550 = vpack.c.b16 %v539, %v538
        %v551 = vpack.c.b16 %v541, %v540
        %v552 = vpack.c.b16 %v543, %v542
        %v553 = vpack.c.b16 %v545, %v544
        %562 = vmatprep.subr.bf16.mxu0 0
        %563 = vmatpush1.bf16.msra.mxu0 %v546
        %564 = vmatprep.subr.bf16.mxu0 0
        %565 = vmatpush1.bf16.msra.mxu0 %v547
        %566 = vmatprep.subr.bf16.mxu0 0
        %567 = vmatpush1.bf16.msra.mxu0 %v548
        %568 = vmatprep.subr.bf16.mxu0 0
        %569 = vmatpush1.bf16.msra.mxu0 %v549
        %570 = vmatprep.subr.bf16.mxu0 0
        %571 = vmatpush1.bf16.msra.mxu0 %v550
        %572 = vmatprep.subr.bf16.mxu0 0
        %573 = vmatpush1.bf16.msra.mxu0 %v551
        %574 = vmatprep.subr.bf16.mxu0 0
        %575 = vmatpush1.bf16.msra.mxu0 %v552
        %576 = vmatprep.subr.bf16.mxu0 0
        %577 = vmatpush1.bf16.msra.mxu0 %v553
        %578 = vmatprep.subr.bf16.mxu0 0
        %579 = vmatpush1.bf16.msra.mxu0 0
        %580 = vmatprep.subr.bf16.mxu0 0
        %581 = vmatpush1.bf16.msra.mxu0 0
        %582 = vmatprep.subr.bf16.mxu0 0
        %583 = vmatpush1.bf16.msra.mxu0 0
        %584 = vmatprep.subr.bf16.mxu0 0
        %585 = vmatpush1.bf16.msra.mxu0 0
        %586 = vmatprep.subr.bf16.mxu0 0
        %587 = vmatpush1.bf16.msra.mxu0 0
        %588 = vmatprep.subr.bf16.mxu0 0
        %589 = vmatpush1.bf16.msra.mxu0 0
        %590 = vmatprep.subr.bf16.mxu0 0
        %591 = vmatpush1.bf16.msra.mxu0 0
        %592 = vmatprep.subr.bf16.mxu0 0
        %593 = vmatpush1.bf16.msra.mxu0 0
        %594 = vmatprep.mubr.bf16.mxu0 0
        %595 = vmatmul.mubr.bf16.gmra.mrb[0].mxu0 %v490
        %v596 = vpop.f32.mrb[0].mxu0
        %v597 = vadd.f32 %v512, %v596
        %v598 = vpop.f32.mrb[0].mxu0
        %v599 = vpop.f32.mrb[0].mxu0
        %v600 = vpop.f32.mrb[0].mxu0
        %601 = vdwg.mxu0
        %v602 = vmax.f32 %v597, 0.0
        %v603 = vpack.c.bf16 %v602, %v602
        %v604 = vld [vmem:[#allocation2] sm:$0xff]
        %v605 = vld [vmem:[#allocation2 + $0x8] sm:$0xff]
        %v606 = vld [vmem:[#allocation2 + $0x10] sm:$0xff]
        %v607 = vld [vmem:[#allocation2 + $0x18] sm:$0xff]
        %v608 = vld [vmem:[#allocation2 + $0x20] sm:$0xff]
        %v609 = vld [vmem:[#allocation2 + $0x28] sm:$0xff]
        %v610 = vld [vmem:[#allocation2 + $0x30] sm:$0xff]
        %v611 = vld [vmem:[#allocation2 + $0x38] sm:$0xff]
        %v612 = vld [vmem:[#allocation2 + $0x40] sm:$0xff]
        %v613 = vld [vmem:[#allocation2 + $0x48] sm:$0xff]
        %v614 = vld [vmem:[#allocation2 + $0x50] sm:$0xff]
        %v615 = vld [vmem:[#allocation2 + $0x58] sm:$0xff]
        %v616 = vld [vmem:[#allocation2 + $0x60] sm:$0xff]
        %v617 = vld [vmem:[#allocation2 + $0x68] sm:$0xff]
        %v618 = vld [vmem:[#allocation2 + $0x70] sm:$0xff]
        %v619 = vld [vmem:[#allocation2 + $0x78] sm:$0xff]
        %v620 = vld [vmem:[%s5] sm:$0x3]
        %v622 = vlaneseq
        %v623 = vshrl.u32 %v622, 7
        %v624 = vsub.s32 0, %v623
        %v625 = vrot.slane %v620, %v624
        %v626 = vlaneseq
        %v627 = vshrl.u32 %v626, 7
        %v628 = vsub.s32 1, %v627
        %v629 = vrot.slane %v620, %v628
        %v648 = vunpack.c.l.b16 %v604
        %v649 = vunpack.c.h.b16 %v604
        %v650 = vunpack.c.l.b16 %v605
        %v651 = vunpack.c.h.b16 %v605
        %v652 = vunpack.c.l.b16 %v606
        %v653 = vunpack.c.h.b16 %v606
        %v654 = vunpack.c.l.b16 %v607
        %v655 = vunpack.c.h.b16 %v607
        %v656 = vunpack.c.l.b16 %v608
        %v657 = vunpack.c.h.b16 %v608
        %v658 = vunpack.c.l.b16 %v609
        %v659 = vunpack.c.h.b16 %v609
        %v660 = vunpack.c.l.b16 %v610
        %v661 = vunpack.c.h.b16 %v610
        %v662 = vunpack.c.l.b16 %v611
        %v663 = vunpack.c.h.b16 %v611
        %v664 = vunpack.c.l.b16 %v612
        %v665 = vunpack.c.h.b16 %v612
        %v666 = vunpack.c.l.b16 %v613
        %v667 = vunpack.c.h.b16 %v613
        %v668 = vunpack.c.l.b16 %v614
        %v669 = vunpack.c.h.b16 %v614
        %v670 = vunpack.c.l.b16 %v615
        %v671 = vunpack.c.h.b16 %v615
        %v672 = vunpack.c.l.b16 %v616
        %v673 = vunpack.c.h.b16 %v616
        %v674 = vunpack.c.l.b16 %v617
        %v675 = vunpack.c.h.b16 %v617
        %v676 = vunpack.c.l.b16 %v618
        %v677 = vunpack.c.h.b16 %v618
        %v678 = vunpack.c.l.b16 %v619
        %v679 = vunpack.c.h.b16 %v619
        %v680 = vpack.c.b16 %v650, %v648
        %v681 = vpack.c.b16 %v651, %v649
        %v682 = vpack.c.b16 %v654, %v652
        %v683 = vpack.c.b16 %v655, %v653
        %v684 = vpack.c.b16 %v658, %v656
        %v685 = vpack.c.b16 %v659, %v657
        %v686 = vpack.c.b16 %v662, %v660
        %v687 = vpack.c.b16 %v663, %v661
        %v688 = vpack.c.b16 %v666, %v664
        %v689 = vpack.c.b16 %v667, %v665
        %v690 = vpack.c.b16 %v670, %v668
        %v691 = vpack.c.b16 %v671, %v669
        %v692 = vpack.c.b16 %v674, %v672
        %v693 = vpack.c.b16 %v675, %v673
        %v694 = vpack.c.b16 %v678, %v676
        %v695 = vpack.c.b16 %v679, %v677
        %712 = vmatprep.subr.bf16.mxu0 %v681
        %713 = vmatpush1.bf16.msra.mxu0 %v680
        %714 = vmatprep.subr.bf16.mxu0 %v683
        %715 = vmatpush1.bf16.msra.mxu0 %v682
        %716 = vmatprep.subr.bf16.mxu0 %v685
        %717 = vmatpush1.bf16.msra.mxu0 %v684
        %718 = vmatprep.subr.bf16.mxu0 %v687
        %719 = vmatpush1.bf16.msra.mxu0 %v686
        %720 = vmatprep.subr.bf16.mxu0 %v689
        %721 = vmatpush1.bf16.msra.mxu0 %v688
        %722 = vmatprep.subr.bf16.mxu0 %v691
        %723 = vmatpush1.bf16.msra.mxu0 %v690
        %724 = vmatprep.subr.bf16.mxu0 %v693
        %725 = vmatpush1.bf16.msra.mxu0 %v692
        %726 = vmatprep.subr.bf16.mxu0 %v695
        %727 = vmatpush1.bf16.msra.mxu0 %v694
        %728 = vmatprep.subr.bf16.mxu0 0
        %729 = vmatpush1.bf16.msra.mxu0 0
        %730 = vmatprep.subr.bf16.mxu0 0
        %731 = vmatpush1.bf16.msra.mxu0 0
        %732 = vmatprep.subr.bf16.mxu0 0
        %733 = vmatpush1.bf16.msra.mxu0 0
        %734 = vmatprep.subr.bf16.mxu0 0
        %735 = vmatpush1.bf16.msra.mxu0 0
        %736 = vmatprep.subr.bf16.mxu0 0
        %737 = vmatpush1.bf16.msra.mxu0 0
        %738 = vmatprep.subr.bf16.mxu0 0
        %739 = vmatpush1.bf16.msra.mxu0 0
        %740 = vmatprep.subr.bf16.mxu0 0
        %741 = vmatpush1.bf16.msra.mxu0 0
        %742 = vmatprep.subr.bf16.mxu0 0
        %743 = vmatpush1.bf16.msra.mxu0 0
        %744 = vmatprep.mubr.bf16.mxu0 0
        %745 = vmatmul.mubr.bf16.gmra.mrb[0].mxu0 %v603
        %v746 = vpop.f32.mrb[0].mxu0
        %v747 = vadd.f32 %v625, %v746
        %v748 = vpop.f32.mrb[0].mxu0
        %v749 = vadd.f32 %v629, %v748
        %v750 = vpop.f32.mrb[0].mxu0
        %v751 = vpop.f32.mrb[0].mxu0
        %752 = vdwg.mxu0
        %v753 = vmul.f32 %v749, 0.5
        %v754 = vmul.f32 %v753, 1.442695
        %v755 = vpow.pop %v754
        %v756 = vld [vmem:[%s487] sm:$0xff]
        %v757 = vmul.f32 %v756, %v755
        %v758 = vadd.f32 %v747, %v757
        %v759 = vpack.c.bf16 %v758, %v758
        %v760 = vld [vmem:[#allocation5] sm:$0xf]
        %v761 = vld [vmem:[#allocation5 + $0x4] sm:$0xf]
        %v762 = vld [vmem:[#allocation5 + $0x8] sm:$0xf]
        %v763 = vld [vmem:[#allocation5 + $0xc] sm:$0xf]
        %v764 = vld [vmem:[#allocation5 + $0x10] sm:$0xf]
        %v765 = vld [vmem:[#allocation5 + $0x14] sm:$0xf]
        %v766 = vld [vmem:[#allocation5 + $0x18] sm:$0xf]
        %v767 = vld [vmem:[#allocation5 + $0x1c] sm:$0xf]
        %v768 = vld [vmem:[#allocation5 + $0x20] sm:$0xf]
        %v769 = vld [vmem:[#allocation5 + $0x24] sm:$0xf]
        %v770 = vld [vmem:[#allocation5 + $0x28] sm:$0xf]
        %v771 = vld [vmem:[#allocation5 + $0x2c] sm:$0xf]
        %v772 = vld [vmem:[#allocation5 + $0x30] sm:$0xf]
        %v773 = vld [vmem:[#allocation5 + $0x34] sm:$0xf]
        %v774 = vld [vmem:[#allocation5 + $0x38] sm:$0xf]
        %v775 = vld [vmem:[#allocation5 + $0x3c] sm:$0xf]
        %v776 = vld [vmem:[%s7] sm:$0x1]
        %v778 = vlaneseq
        %v779 = vshrl.u32 %v778, 7
        %v780 = vsub.s32 0, %v779
        %v781 = vrot.slane %v776, %v780
        %v799 = vunpack.c.l.b16 %v760
        %v800 = vunpack.c.l.b16 %v761
        %v801 = vunpack.c.l.b16 %v762
        %v802 = vunpack.c.l.b16 %v763
        %v803 = vunpack.c.l.b16 %v764
        %v804 = vunpack.c.l.b16 %v765
        %v805 = vunpack.c.l.b16 %v766
        %v806 = vunpack.c.l.b16 %v767
        %v807 = vunpack.c.l.b16 %v768
        %v808 = vunpack.c.l.b16 %v769
        %v809 = vunpack.c.l.b16 %v770
        %v810 = vunpack.c.l.b16 %v771
        %v811 = vunpack.c.l.b16 %v772
        %v812 = vunpack.c.l.b16 %v773
        %v813 = vunpack.c.l.b16 %v774
        %v814 = vunpack.c.l.b16 %v775
        %v815 = vpack.c.b16 %v800, %v799
        %v816 = vpack.c.b16 %v802, %v801
        %v817 = vpack.c.b16 %v804, %v803
        %v818 = vpack.c.b16 %v806, %v805
        %v819 = vpack.c.b16 %v808, %v807
        %v820 = vpack.c.b16 %v810, %v809
        %v821 = vpack.c.b16 %v812, %v811
        %v822 = vpack.c.b16 %v814, %v813
        %831 = vmatprep.subr.bf16.mxu0 0
        %832 = vmatpush1.bf16.msra.mxu0 %v815
        %833 = vmatprep.subr.bf16.mxu0 0
        %834 = vmatpush1.bf16.msra.mxu0 %v816
        %835 = vmatprep.subr.bf16.mxu0 0
        %836 = vmatpush1.bf16.msra.mxu0 %v817
        %837 = vmatprep.subr.bf16.mxu0 0
        %838 = vmatpush1.bf16.msra.mxu0 %v818
        %839 = vmatprep.subr.bf16.mxu0 0
        %840 = vmatpush1.bf16.msra.mxu0 %v819
        %841 = vmatprep.subr.bf16.mxu0 0
        %842 = vmatpush1.bf16.msra.mxu0 %v820
        %843 = vmatprep.subr.bf16.mxu0 0
        %844 = vmatpush1.bf16.msra.mxu0 %v821
        %845 = vmatprep.subr.bf16.mxu0 0
        %846 = vmatpush1.bf16.msra.mxu0 %v822
        %847 = vmatprep.subr.bf16.mxu0 0
        %848 = vmatpush1.bf16.msra.mxu0 0
        %849 = vmatprep.subr.bf16.mxu0 0
        %850 = vmatpush1.bf16.msra.mxu0 0
        %851 = vmatprep.subr.bf16.mxu0 0
        %852 = vmatpush1.bf16.msra.mxu0 0
        %853 = vmatprep.subr.bf16.mxu0 0
        %854 = vmatpush1.bf16.msra.mxu0 0
        %855 = vmatprep.subr.bf16.mxu0 0
        %856 = vmatpush1.bf16.msra.mxu0 0
        %857 = vmatprep.subr.bf16.mxu0 0
        %858 = vmatpush1.bf16.msra.mxu0 0
        %859 = vmatprep.subr.bf16.mxu0 0
        %860 = vmatpush1.bf16.msra.mxu0 0
        %861 = vmatprep.subr.bf16.mxu0 0
        %862 = vmatpush1.bf16.msra.mxu0 0
        %863 = vmatprep.mubr.bf16.mxu0 0
        %864 = vmatmul.mubr.bf16.gmra.mrb[0].mxu0 %v759
        %v865 = vpop.f32.mrb[0].mxu0
        %v866 = vadd.f32 %v781, %v865
        %v867 = vpop.f32.mrb[0].mxu0
        %v868 = vpop.f32.mrb[0].mxu0
        %v869 = vpop.f32.mrb[0].mxu0
        %870 = vdwg.mxu0
        %v871 = vmax.f32 %v866, 0.0
        %v872 = vpack.c.bf16 %v871, %v871
        %v873 = vld [vmem:[#allocation7] sm:$0xf]
        %v874 = vld [vmem:[#allocation7 + $0x4] sm:$0xf]
        %v875 = vld [vmem:[#allocation7 + $0x8] sm:$0xf]
        %v876 = vld [vmem:[#allocation7 + $0xc] sm:$0xf]
        %v877 = vld [vmem:[#allocation7 + $0x10] sm:$0xf]
        %v878 = vld [vmem:[#allocation7 + $0x14] sm:$0xf]
        %v879 = vld [vmem:[#allocation7 + $0x18] sm:$0xf]
        %v880 = vld [vmem:[#allocation7 + $0x1c] sm:$0xf]
        %v881 = vld [vmem:[#allocation7 + $0x20] sm:$0xf]
        %v882 = vld [vmem:[#allocation7 + $0x24] sm:$0xf]
        %v883 = vld [vmem:[#allocation7 + $0x28] sm:$0xf]
        %v884 = vld [vmem:[#allocation7 + $0x2c] sm:$0xf]
        %v885 = vld [vmem:[#allocation7 + $0x30] sm:$0xf]
        %v886 = vld [vmem:[#allocation7 + $0x34] sm:$0xf]
        %v887 = vld [vmem:[#allocation7 + $0x38] sm:$0xf]
        %v888 = vld [vmem:[#allocation7 + $0x3c] sm:$0xf]
        %v889 = vld [vmem:[%s9] sm:$0x1]
        %v891 = vlaneseq
        %v892 = vshrl.u32 %v891, 7
        %v893 = vsub.s32 0, %v892
        %v894 = vrot.slane %v889, %v893
        %v912 = vunpack.c.l.b16 %v873
        %v913 = vunpack.c.l.b16 %v874
        %v914 = vunpack.c.l.b16 %v875
        %v915 = vunpack.c.l.b16 %v876
        %v916 = vunpack.c.l.b16 %v877
        %v917 = vunpack.c.l.b16 %v878
        %v918 = vunpack.c.l.b16 %v879
        %v919 = vunpack.c.l.b16 %v880
        %v920 = vunpack.c.l.b16 %v881
        %v921 = vunpack.c.l.b16 %v882
        %v922 = vunpack.c.l.b16 %v883
        %v923 = vunpack.c.l.b16 %v884
        %v924 = vunpack.c.l.b16 %v885
        %v925 = vunpack.c.l.b16 %v886
        %v926 = vunpack.c.l.b16 %v887
        %v927 = vunpack.c.l.b16 %v888
        %v928 = vpack.c.b16 %v913, %v912
        %v929 = vpack.c.b16 %v915, %v914
        %v930 = vpack.c.b16 %v917, %v916
        %v931 = vpack.c.b16 %v919, %v918
        %v932 = vpack.c.b16 %v921, %v920
        %v933 = vpack.c.b16 %v923, %v922
        %v934 = vpack.c.b16 %v925, %v924
        %v935 = vpack.c.b16 %v927, %v926
        %944 = vmatprep.subr.bf16.mxu0 0
        %945 = vmatpush1.bf16.msra.mxu0 %v928
        %946 = vmatprep.subr.bf16.mxu0 0
        %947 = vmatpush1.bf16.msra.mxu0 %v929
        %948 = vmatprep.subr.bf16.mxu0 0
        %949 = vmatpush1.bf16.msra.mxu0 %v930
        %950 = vmatprep.subr.bf16.mxu0 0
        %951 = vmatpush1.bf16.msra.mxu0 %v931
        %952 = vmatprep.subr.bf16.mxu0 0
        %953 = vmatpush1.bf16.msra.mxu0 %v932
        %954 = vmatprep.subr.bf16.mxu0 0
        %955 = vmatpush1.bf16.msra.mxu0 %v933
        %956 = vmatprep.subr.bf16.mxu0 0
        %957 = vmatpush1.bf16.msra.mxu0 %v934
        %958 = vmatprep.subr.bf16.mxu0 0
        %959 = vmatpush1.bf16.msra.mxu0 %v935
        %960 = vmatprep.subr.bf16.mxu0 0
        %961 = vmatpush1.bf16.msra.mxu0 0
        %962 = vmatprep.subr.bf16.mxu0 0
        %963 = vmatpush1.bf16.msra.mxu0 0
        %964 = vmatprep.subr.bf16.mxu0 0
        %965 = vmatpush1.bf16.msra.mxu0 0
        %966 = vmatprep.subr.bf16.mxu0 0
        %967 = vmatpush1.bf16.msra.mxu0 0
        %968 = vmatprep.subr.bf16.mxu0 0
        %969 = vmatpush1.bf16.msra.mxu0 0
        %970 = vmatprep.subr.bf16.mxu0 0
        %971 = vmatpush1.bf16.msra.mxu0 0
        %972 = vmatprep.subr.bf16.mxu0 0
        %973 = vmatpush1.bf16.msra.mxu0 0
        %974 = vmatprep.subr.bf16.mxu0 0
        %975 = vmatpush1.bf16.msra.mxu0 0
        %976 = vmatprep.mubr.bf16.mxu0 0
        %977 = vmatmul.mubr.bf16.gmra.mrb[0].mxu0 %v872
        %v978 = vpop.f32.mrb[0].mxu0
        %v979 = vadd.f32 %v894, %v978
        %v980 = vpop.f32.mrb[0].mxu0
        %v981 = vpop.f32.mrb[0].mxu0
        %v982 = vpop.f32.mrb[0].mxu0
        %983 = vdwg.mxu0
        %984 = vst [vmem:[%s465] sm:$0xff] %v979
        %985 = vst [vmem:[%s472] sm:$0xff] %v747
        %986 = vst [vmem:[%s479] sm:$0xff] %v749
        %s987 = sand.u32 %s260, 1
        %s988 = scalar_lea.sflag [#allocation4], %s987
        %s989 = sand.u32 %s260, 1
        %s990 = smul.addr %s989, 8
        %s991 = scalar_lea.vmem [#allocation8], %s990
        %s992 = sand.u32 %s32, 1
        %s993 = scalar_lea.sflag [#allocation10], %s992
        %s994 = sand.u32 %s286, 1
        %s995 = smul.addr %s994, 8
        %s996 = scalar_lea.vmem [#allocation9], %s995
        %s997 = sand.u32 %s32, 1
        %s998 = scalar_lea.sflag [#allocation10], %s997
        %s999 = sand.u32 %s312, 1
        %s1000 = smul.addr %s999, 8
        %s1001 = scalar_lea.vmem [#allocation11], %s1000
        // Predicated region
        $region73: #{vae_forward.1} parent=59 // pred_check
          %p1002 = pneg %p270
        $region74: #{vae_forward.1} parent=59 // pred_check_branch
          %1004 = sbr.rel (%p1002) target = $region76
        $region75: #{vae_forward.1} parent=59 // pred_region
          %s1006 = ssub.s32 128, 128
          %1007 = vsyncadd %s988, %s1006
          %s1008 = smul.addr %s32, 128
          %s1009 = scalar_lea.hbm %s10, %s1008
          %s1011 = sshll.u32 %s991, 4
          %s1012 = int_to_ptr.vmem [resolvable:$true] %s1011
          %1014 = dma.vmem_to_hbm [thread:$0]  %s1012, 128, %s1009, %s988
        $region76: #{vae_forward.1} parent=59 // pred_fallthru
          _
        // Predicated region
        $region77: #{vae_forward.1} parent=59 // pred_check
          %p1015 = pneg %p296
        $region78: #{vae_forward.1} parent=59 // pred_check_branch
          %1017 = sbr.rel (%p1015) target = $region80
        $region79: #{vae_forward.1} parent=59 // pred_region
          %s1019 = ssub.s32 128, 128
          %1020 = vsyncadd %s993, %s1019
          %s1021 = smul.addr %s32, 128
          %s1022 = scalar_lea.hbm %s11, %s1021
          %s1024 = sshll.u32 %s996, 4
          %s1025 = int_to_ptr.vmem [resolvable:$true] %s1024
          %1027 = dma.vmem_to_hbm [thread:$0]  %s1025, 128, %s1022, %s993
        $region80: #{vae_forward.1} parent=59 // pred_fallthru
          _
        // Predicated region
        $region81: #{vae_forward.1} parent=59 // pred_check
          %p1028 = pneg %p322
        $region82: #{vae_forward.1} parent=59 // pred_check_branch
          %1030 = sbr.rel (%p1028) target = $region84
        $region83: #{vae_forward.1} parent=59 // pred_region
          %s1032 = ssub.s32 128, 128
          %1033 = vsyncadd %s998, %s1032
          %s1034 = smul.addr %s32, 128
          %s1035 = scalar_lea.hbm %s12, %s1034
          %s1037 = sshll.u32 %s1001, 4
          %s1038 = int_to_ptr.vmem [resolvable:$true] %s1037
          %1040 = dma.vmem_to_hbm [thread:$0]  %s1038, 128, %s1035, %s998
        $region84: #{vae_forward.1} parent=59 // pred_fallthru
          _
      $region60: #{vae_forward.1} parent=5 // pred_fallthru
        _
      %p1041 = scmp.le.s32.totalorder 2, %s27
      // Predicated region
      $region85: #{vae_forward.1} parent=5 // pred_check
        %p1042 = pneg %p1041
      $region86: #{vae_forward.1} parent=5 // pred_check_branch
        %1044 = sbr.rel (%p1042) target = $region88
      $region87: #{vae_forward.1} parent=5 // pred_region
        %s1045 = ssub.s32 %s27, 2
        // Predicated region
        $region89: #{vae_forward.1} parent=87 // pred_check
          %p1046 = pneg %p276
        $region90: #{vae_forward.1} parent=87 // pred_check_branch
          %1048 = sbr.rel (%p1046) target = $region92
        $region91: #{vae_forward.1} parent=87 // pred_region
          %s1049 = sand.u32 %s261, 1
          %s1050 = scalar_lea.sflag [#allocation4], %s1049
          %s1051 = sand.u32 %s261, 1
          %s1052 = smul.addr %s1051, 8
          %s1053 = scalar_lea.vmem [#allocation8], %s1052
          %1054 = dma.done %s1050, 128
        $region92: #{vae_forward.1} parent=87 // pred_fallthru
          _
        // Predicated region
        $region93: #{vae_forward.1} parent=87 // pred_check
          %p1055 = pneg %p302
        $region94: #{vae_forward.1} parent=87 // pred_check_branch
          %1057 = sbr.rel (%p1055) target = $region96
        $region95: #{vae_forward.1} parent=87 // pred_region
          %s1058 = sand.u32 %s33, 1
          %s1059 = scalar_lea.sflag [#allocation10], %s1058
          %s1060 = sand.u32 %s287, 1
          %s1061 = smul.addr %s1060, 8
          %s1062 = scalar_lea.vmem [#allocation9], %s1061
          %1063 = dma.done %s1059, 128
        $region96: #{vae_forward.1} parent=87 // pred_fallthru
          _
        // Predicated region
        $region97: #{vae_forward.1} parent=87 // pred_check
          %p1064 = pneg %p328
        $region98: #{vae_forward.1} parent=87 // pred_check_branch
          %1066 = sbr.rel (%p1064) target = $region100
        $region99: #{vae_forward.1} parent=87 // pred_region
          %s1067 = sand.u32 %s33, 1
          %s1068 = scalar_lea.sflag [#allocation10], %s1067
          %s1069 = sand.u32 %s313, 1
          %s1070 = smul.addr %s1069, 8
          %s1071 = scalar_lea.vmem [#allocation11], %s1070
          %1072 = dma.done %s1068, 128
        $region100: #{vae_forward.1} parent=87 // pred_fallthru
          _
      $region88: #{vae_forward.1} parent=5 // pred_fallthru
        _
    $region6: #{vae_forward.1} parent=1 // loop_footer
      %s31 = sadd.s32 1, %s27
    $region7: #{vae_forward.1} parent=1 // loop_footer_branch
      %26 = sbr.rel target = $region3
    $region8: #{vae_forward.1} parent=1 // loop_exit
      _
    %1073 = vsyncpa [#allocation3], 1
    %s1074 = scalar_lea.sflag [#allocation3], 1
    %1075 = vsyncpa %s1074, 1
    %1076 = vsyncpa [#allocation6], 1
    %1077 = vsyncpa [#allocation4], 1
    %s1078 = scalar_lea.sflag [#allocation4], 1
    %1079 = vsyncpa %s1078, 1
    %1080 = vsyncpa [#allocation10], 1
    %s1081 = scalar_lea.sflag [#allocation10], 1
    %1082 = vsyncpa %s1081, 1

</llo_original>
